<compile_context>
chip_gen: v7x
topology: tpu7x:2x2x1
jax: 0.10.0
libtpu: 0.0.40
codegen_flags: <defaults>
</compile_context>

<pallas_src>
import jax
import jax.numpy as jnp
from jax.experimental import pallas as pl
from jax.experimental.pallas import tpu as pltpu

HIDDEN = 64
LANE = 128
SUBLANE = 16  # row multiple safe for both f32 and bf16 tiles


def _round_up(n, m):
    return (n + m - 1) // m * m


def policy_kernel(x_ref, w1_ref, b1_ref, w2_ref, b2_ref, w3_ref, b3_ref,
                  mean_ref):
    x = x_ref[...]
    # fc1 + relu   (f32 accumulation on the MXU, bias add / relu on the VPU)
    h1 = jnp.dot(x, w1_ref[...], preferred_element_type=jnp.float32) + b1_ref[...]
    h1 = jnp.maximum(h1, 0.0).astype(w2_ref.dtype)
    # fc2 + relu
    h2 = jnp.dot(h1, w2_ref[...], preferred_element_type=jnp.float32) + b2_ref[...]
    h2 = jnp.maximum(h2, 0.0).astype(w3_ref.dtype)
    # fc3 -> mean (lane-dense 128-wide matmul, then store only the real
    # out_dim columns: tiny HBM writeback instead of a padded 128-lane one)
    mean = jnp.dot(h2, w3_ref[...], preferred_element_type=jnp.float32) + b3_ref[...]
    out_dim = mean_ref.shape[-1]
    mean_ref[...] = mean[:, :out_dim].astype(mean_ref.dtype)


def _prepare_padded_params(params, compute_dtype):
    """Zero-pad hidden/output dims to 128 lanes; weights in compute_dtype,
    biases in f32 (row vectors).  Padding is exact (padded cols stay 0)."""
    w1, b1, w2, b2, w3, b3, _ = params
    out_dim = w3.shape[1]
    hp = _round_up(HIDDEN, LANE)      # 128
    op = _round_up(out_dim, LANE)     # 128

    w1p = jnp.zeros((w1.shape[0], hp), compute_dtype).at[:, :HIDDEN].set(
        w1.astype(compute_dtype))
    b1p = jnp.zeros((1, hp), jnp.float32).at[0, :HIDDEN].set(b1)
    w2p = jnp.zeros((hp, hp), compute_dtype).at[:HIDDEN, :HIDDEN].set(
        w2.astype(compute_dtype))
    b2p = jnp.zeros((1, hp), jnp.float32).at[0, :HIDDEN].set(b2)
    w3p = jnp.zeros((hp, op), compute_dtype).at[:HIDDEN, :out_dim].set(
        w3.astype(compute_dtype))
    b3p = jnp.zeros((1, op), jnp.float32).at[0, :out_dim].set(b3)
    return (w1p, b1p, w2p, b2p, w3p, b3p), out_dim, op


def policy_forward(x, params, *, block_rows=1024, compute_dtype=jnp.bfloat16):
    """x: (B, input_dim). Returns (mean (B, out_dim) f32, std (out_dim,) f32)."""
    log_std = params[6]
    (w1p, b1p, w2p, b2p, w3p, b3p), out_dim, op = _prepare_padded_params(
        params, compute_dtype)

    B, input_dim = x.shape
    # Batch tile: multiple of 16 rows (safe for f32 and bf16); aim for >=2
    # grid steps (both v7x TensorCores / pipeline overlap on v5e/v6e) while
    # capping at block_rows so VMEM stays small on every generation.
    half = -(-B // 2)                                 # ceil(B / 2)
    TB = min(_round_up(block_rows, SUBLANE), _round_up(max(half, 1), SUBLANE))
    TB = max(TB, SUBLANE)
    B_pad = _round_up(B, TB)
    grid = (B_pad // TB,)

    xp = x.astype(compute_dtype)
    if B_pad != B:
        xp = jnp.zeros((B_pad, input_dim), compute_dtype).at[:B].set(xp)

    hp = w2p.shape[0]
    itemsize = jnp.dtype(compute_dtype).itemsize
    weight_bytes = (w1p.size + w2p.size + w3p.size) * itemsize \
        + (b1p.size + b2p.size + b3p.size) * 4
    cost = pl.CostEstimate(
        flops=2 * B_pad * (input_dim * hp + hp * hp + hp * op),
        transcendentals=0,
        bytes_accessed=B_pad * input_dim * itemsize + B_pad * out_dim * 4
        + weight_bytes,
    )

    mean_padded = pl.pallas_call(
        policy_kernel,
        out_shape=jax.ShapeDtypeStruct((B_pad, out_dim), jnp.float32),
        grid=grid,
        in_specs=[
            pl.BlockSpec((TB, input_dim), lambda i: (i, 0)),     # x tile
            pl.BlockSpec(w1p.shape, lambda i: (0, 0)),           # resident weights
            pl.BlockSpec(b1p.shape, lambda i: (0, 0)),
            pl.BlockSpec(w2p.shape, lambda i: (0, 0)),
            pl.BlockSpec(b2p.shape, lambda i: (0, 0)),
            pl.BlockSpec(w3p.shape, lambda i: (0, 0)),
            pl.BlockSpec(b3p.shape, lambda i: (0, 0)),
        ],
        out_specs=pl.BlockSpec((TB, out_dim), lambda i: (i, 0)),  # un-padded out
        compiler_params=pltpu.CompilerParams(
            dimension_semantics=("parallel",)),
        cost_estimate=cost,
    )(xp, w1p, b1p, w2p, b2p, w3p, b3p)

    mean = mean_padded[:B]
    std = jnp.exp(log_std)  # batch-independent: plain JAX, not in the kernel
    return mean, std


def init_params(key, input_dim, output_dim):
    """Deterministic init mimicking PyTorch Linear default U(-1/sqrt(fan_in), +)."""
    def linear(key, fan_in, fan_out):
        kw, kb = jax.random.split(key)
        bound = 1.0 / jnp.sqrt(fan_in)
        w = jax.random.uniform(kw, (fan_in, fan_out), jnp.float32, -bound, bound)
        b = jax.random.uniform(kb, (fan_out,), jnp.float32, -bound, bound)
        return w, b

    k1, k2, k3 = jax.random.split(key, 3)
    w1, b1 = linear(k1, input_dim, HIDDEN)
    w2, b2 = linear(k2, HIDDEN, HIDDEN)
    w3, b3 = linear(k3, HIDDEN, output_dim)
    log_std = jnp.zeros((output_dim,), jnp.float32)
    return (w1, b1, w2, b2, w3, b3, log_std)


def _reference(x, params):
    w1, b1, w2, b2, w3, b3, log_std = params
    h1 = jnp.maximum(x @ w1 + b1, 0.0)
    h2 = jnp.maximum(h1 @ w2 + b2, 0.0)
    return h2 @ w3 + b3, jnp.exp(log_std)


if __name__ == "__main__":
    key = jax.random.PRNGKey(0)
    kx, kp = jax.random.split(key)

    batch, input_dim, output_dim = 8, 16, 4
    x = jax.random.normal(kx, (batch, input_dim), jnp.float32)
    params = init_params(kp, input_dim, output_dim)

    mean_ref, std_ref = _reference(x, params)

    # f32 path (exact check)
    mean, std = policy_forward(x, params, compute_dtype=jnp.float32)
    jax.block_until_ready((mean, std))
    assert mean.shape == (batch, output_dim) and std.shape == (output_dim,)
    assert jnp.allclose(mean, mean_ref, atol=1e-5), "f32 mean mismatch"
    assert jnp.allclose(std, std_ref, atol=1e-6), "std mismatch"

    # default bf16-operand path (f32 accumulation) — looser tolerance
    mean_bf, std_bf = policy_forward(x, params)
    jax.block_until_ready((mean_bf, std_bf))
    assert mean_bf.shape == (batch, output_dim)
    assert jnp.allclose(mean_bf, mean_ref, atol=5e-2, rtol=5e-2), "bf16 mean mismatch"
    assert jnp.allclose(std_bf, std_ref, atol=1e-6), "bf16 std mismatch"

    # larger batch: exercises the multi-step grid / pipelined path
    xb = jax.random.normal(kx, (3000, input_dim), jnp.float32)
    mean_b_ref, _ = _reference(xb, params)
    mean_b, _ = policy_forward(xb, params, compute_dtype=jnp.float32)
    jax.block_until_ready(mean_b)
    assert mean_b.shape == (3000, output_dim)
    assert jnp.allclose(mean_b, mean_b_ref, atol=1e-5), "large-batch mean mismatch"

    print("KERNEL_OK")
</pallas_src>

<mosaic_0001>
module attributes {stable_mosaic.version = 11 : i64} {
  func.func @policy_kernel(%arg0: i32, %arg1: memref<16x16xf32, #tpu.memory_space<vmem>>, %arg2: memref<16x128xf32, #tpu.memory_space<vmem>>, %arg3: memref<1x128xf32, #tpu.memory_space<vmem>>, %arg4: memref<128x128xf32, #tpu.memory_space<vmem>>, %arg5: memref<1x128xf32, #tpu.memory_space<vmem>>, %arg6: memref<128x128xf32, #tpu.memory_space<vmem>>, %arg7: memref<1x128xf32, #tpu.memory_space<vmem>>, %arg8: memref<16x4xf32, #tpu.memory_space<vmem>>) attributes {dimension_semantics = [#tpu.dimension_semantics<parallel>], iteration_bounds = array<i64: 1>, scalar_prefetch = 0 : i64, scratch_operands = 0 : i64, tpu.core_type = #tpu.core_type<tc>, window_params = [{transform_indices = @transform_0, window_bounds = array<i64: 16, 16>}, {pipeline_mode = #tpu.pipeline_mode<synchronous>, transform_indices = @transform_1, window_bounds = array<i64: 16, 128>}, {pipeline_mode = #tpu.pipeline_mode<synchronous>, transform_indices = @transform_2, window_bounds = array<i64: 1, 128>}, {pipeline_mode = #tpu.pipeline_mode<synchronous>, transform_indices = @transform_3, window_bounds = array<i64: 128, 128>}, {pipeline_mode = #tpu.pipeline_mode<synchronous>, transform_indices = @transform_4, window_bounds = array<i64: 1, 128>}, {pipeline_mode = #tpu.pipeline_mode<synchronous>, transform_indices = @transform_5, window_bounds = array<i64: 128, 128>}, {pipeline_mode = #tpu.pipeline_mode<synchronous>, transform_indices = @transform_6, window_bounds = array<i64: 1, 128>}, {transform_indices = @transform_7, window_bounds = array<i64: 16, 4>}]} {
    %c0 = arith.constant 0 : index
    %c0_0 = arith.constant 0 : index
    %0 = vector.load %arg1[%c0, %c0_0] : memref<16x16xf32, #tpu.memory_space<vmem>>, vector<16x16xf32>
    %c0_1 = arith.constant 0 : index
    %c0_2 = arith.constant 0 : index
    %1 = vector.load %arg2[%c0_1, %c0_2] : memref<16x128xf32, #tpu.memory_space<vmem>>, vector<16x128xf32>
    %cst = arith.constant dense<0.000000e+00> : vector<16x128xf32>
    %2 = tpu.matmul %0, %1, %cst {dimension_numbers = #tpu.dot_dimension_numbers<[1], [0], [0], [1], [0, 0, 1, 1], [], []>} : vector<16x16xf32>, vector<16x128xf32>, vector<16x128xf32> -> vector<16x128xf32>
    %c0_3 = arith.constant 0 : index
    %c0_4 = arith.constant 0 : index
    %3 = vector.load %arg3[%c0_3, %c0_4] : memref<1x128xf32, #tpu.memory_space<vmem>>, vector<1x128xf32>
    %4 = vector.broadcast %3 : vector<1x128xf32> to vector<16x128xf32>
    %5 = arith.addf %2, %4 : vector<16x128xf32>
    %cst_5 = arith.constant 0.000000e+00 : f32
    %6 = vector.broadcast %cst_5 : f32 to vector<16x128xf32>
    %7 = arith.maximumf %5, %6 : vector<16x128xf32>
    %c0_6 = arith.constant 0 : index
    %c0_7 = arith.constant 0 : index
    %8 = vector.load %arg4[%c0_6, %c0_7] : memref<128x128xf32, #tpu.memory_space<vmem>>, vector<128x128xf32>
    %cst_8 = arith.constant dense<0.000000e+00> : vector<16x128xf32>
    %9 = tpu.matmul %7, %8, %cst_8 {dimension_numbers = #tpu.dot_dimension_numbers<[1], [0], [0], [1], [0, 0, 1, 1], [], []>} : vector<16x128xf32>, vector<128x128xf32>, vector<16x128xf32> -> vector<16x128xf32>
    %c0_9 = arith.constant 0 : index
    %c0_10 = arith.constant 0 : index
    %10 = vector.load %arg5[%c0_9, %c0_10] : memref<1x128xf32, #tpu.memory_space<vmem>>, vector<1x128xf32>
    %11 = vector.broadcast %10 : vector<1x128xf32> to vector<16x128xf32>
    %12 = arith.addf %9, %11 : vector<16x128xf32>
    %cst_11 = arith.constant 0.000000e+00 : f32
    %13 = vector.broadcast %cst_11 : f32 to vector<16x128xf32>
    %14 = arith.maximumf %12, %13 : vector<16x128xf32>
    %c0_12 = arith.constant 0 : index
    %c0_13 = arith.constant 0 : index
    %15 = vector.load %arg6[%c0_12, %c0_13] : memref<128x128xf32, #tpu.memory_space<vmem>>, vector<128x128xf32>
    %cst_14 = arith.constant dense<0.000000e+00> : vector<16x128xf32>
    %16 = tpu.matmul %14, %15, %cst_14 {dimension_numbers = #tpu.dot_dimension_numbers<[1], [0], [0], [1], [0, 0, 1, 1], [], []>} : vector<16x128xf32>, vector<128x128xf32>, vector<16x128xf32> -> vector<16x128xf32>
    %c0_15 = arith.constant 0 : index
    %c0_16 = arith.constant 0 : index
    %17 = vector.load %arg7[%c0_15, %c0_16] : memref<1x128xf32, #tpu.memory_space<vmem>>, vector<1x128xf32>
    %18 = vector.broadcast %17 : vector<1x128xf32> to vector<16x128xf32>
    %19 = arith.addf %16, %18 : vector<16x128xf32>
    %20 = vector.extract_strided_slice %19 {offsets = [0, 0], sizes = [16, 4], strides = [1, 1]} : vector<16x128xf32> to vector<16x4xf32>
    %c0_17 = arith.constant 0 : index
    %c0_18 = arith.constant 0 : index
    %21 = vector.load %arg8[%c0_17, %c0_18] : memref<16x4xf32, #tpu.memory_space<vmem>>, vector<16x4xf32>
    tpu.vector_store %arg8[%c0_17, %c0_18], %20 {strides = array<i32>} : memref<16x4xf32, #tpu.memory_space<vmem>>, vector<16x4xf32>,
    return
  }
  func.func @transform_0(%arg0: i32) -> (i32, i32) {
    %c0_i32 = arith.constant 0 : i32
    %c0_i32_0 = arith.constant 0 : i32
    return %arg0, %c0_i32 : i32, i32
  }
  func.func @transform_1(%arg0: i32) -> (i32, i32) {
    %c0_i32 = arith.constant 0 : i32
    %c0_i32_0 = arith.constant 0 : i32
    %c0_i32_1 = arith.constant 0 : i32
    return %c0_i32, %c0_i32_0 : i32, i32
  }
  func.func @transform_2(%arg0: i32) -> (i32, i32) {
    %c0_i32 = arith.constant 0 : i32
    %c0_i32_0 = arith.constant 0 : i32
    %c0_i32_1 = arith.constant 0 : i32
    return %c0_i32, %c0_i32_0 : i32, i32
  }
  func.func @transform_3(%arg0: i32) -> (i32, i32) {
    %c0_i32 = arith.constant 0 : i32
    %c0_i32_0 = arith.constant 0 : i32
    %c0_i32_1 = arith.constant 0 : i32
    return %c0_i32, %c0_i32_0 : i32, i32
  }
  func.func @transform_4(%arg0: i32) -> (i32, i32) {
    %c0_i32 = arith.constant 0 : i32
    %c0_i32_0 = arith.constant 0 : i32
    %c0_i32_1 = arith.constant 0 : i32
    return %c0_i32, %c0_i32_0 : i32, i32
  }
  func.func @transform_5(%arg0: i32) -> (i32, i32) {
    %c0_i32 = arith.constant 0 : i32
    %c0_i32_0 = arith.constant 0 : i32
    %c0_i32_1 = arith.constant 0 : i32
    return %c0_i32, %c0_i32_0 : i32, i32
  }
  func.func @transform_6(%arg0: i32) -> (i32, i32) {
    %c0_i32 = arith.constant 0 : i32
    %c0_i32_0 = arith.constant 0 : i32
    %c0_i32_1 = arith.constant 0 : i32
    return %c0_i32, %c0_i32_0 : i32, i32
  }
  func.func @transform_7(%arg0: i32) -> (i32, i32) {
    %c0_i32 = arith.constant 0 : i32
    %c0_i32_0 = arith.constant 0 : i32
    return %arg0, %c0_i32 : i32, i32
  }
}

</mosaic_0001>

<llo_original>
// kernel: tpu_custom_call.1
$region0: #{tpu_custom_call.1}
  #allocation0 [shape = 'u32[]', space=smem, size = 0x4, offset = 0x4, fixed_abs, tag = 'smem constant byte address 0x4 - core index']
  #allocation1 [shape = 'u32[144,128]{1,0:T(1,128)}', space=vmem, size = 0x12000, scoped, tag = 'internal scratch']
  %s0 = inlined_call_operand.hbm [shape: f32[16,16], index: 0, kind: input, shape index: {}]
  %s1 = inlined_call_operand.hbm [shape: f32[16,128], index: 1, kind: input, shape index: {}]
  %s2 = inlined_call_operand.vmem [shape: f32[1,128], index: 2, kind: input, shape index: {}]
  %s3 = inlined_call_operand.hbm [shape: f32[128,128], index: 3, kind: input, shape index: {}]
  %s4 = inlined_call_operand.vmem [shape: f32[1,128], index: 4, kind: input, shape index: {}]
  %s5 = inlined_call_operand.hbm [shape: f32[128,128], index: 5, kind: input, shape index: {}]
  %s6 = inlined_call_operand.vmem [shape: f32[1,128], index: 6, kind: input, shape index: {}]
  %s7 = inlined_call_operand.vmem [shape: f32[16,4], index: 7, kind: output, shape index: {}]
  %s8 = sld [smem:[#allocation0]]
  $region54: #{tpu_custom_call.1} parent=0
    _
  %s10 = ssub.s32 1, %s8
  %s11 = scalar_select 0, %s10, %s8
  $region1: #{tpu_custom_call.1} parent=0
    #allocation2 [shape = 'u8[8192]{0}', space=vmem, size = 0x2000, scoped, tag = 'input window, operand 0, single buffered']
    #allocation3 [shape = 's32[1]{0}', space=sflag, size = 0x4, scoped, tag = 'scoped memory for tpu_custom_call.1']
    #allocation4 [shape = 'u8[8192]{0}', space=vmem, size = 0x2000, scoped, tag = 'input window, operand 1, single buffered']
    #allocation5 [shape = 's32[1]{0}', space=sflag, size = 0x4, scoped, tag = 'scoped memory for tpu_custom_call.1']
    #allocation6 [shape = 'u8[65536]{0}', space=vmem, size = 0x10000, scoped, tag = 'input window, operand 3, single buffered']
    #allocation7 [shape = 'u8[65536]{0}', space=vmem, size = 0x10000, scoped, tag = 'input window, operand 5, single buffered']
    #allocation8 [shape = 's32[1]{0}', space=sflag, size = 0x4, scoped, tag = 'scoped memory for tpu_custom_call.1']
    %12 = vsyncpa [#allocation3], 0
    %13 = vsyncpa [#allocation5], 0
    %14 = vsyncpa [#allocation8], 0
    // Predicated region
    $region2: #{tpu_custom_call.1} parent=1 // pred_check
      _
    $region3: #{tpu_custom_call.1} parent=1 // pred_check_branch
      %16 = sbr.rel (0) target = $region5
    $region4: #{tpu_custom_call.1} parent=1 // pred_region
      %s18 = ssub.s32 256, 256
      %19 = vsyncadd [#allocation3], %s18
      %s20 = sshll.u32 [#allocation2], 4
      %s21 = int_to_ptr.vmem [resolvable:$true] %s20
      %26 = dma.hbm_to_vmem [thread:$0]  %s0, 256, %s21, [#allocation3], 128, 128, 8
    $region5: #{tpu_custom_call.1} parent=1 // pred_fallthru
      _
    // Predicated region
    $region6: #{tpu_custom_call.1} parent=1 // pred_check
      _
    $region7: #{tpu_custom_call.1} parent=1 // pred_check_branch
      %28 = sbr.rel (0) target = $region9
    $region8: #{tpu_custom_call.1} parent=1 // pred_region
      %s30 = ssub.s32 256, 256
      %31 = vsyncadd [#allocation5], %s30
      %s32 = sshll.u32 [#allocation4], 4
      %s33 = int_to_ptr.vmem [resolvable:$true] %s32
      %38 = dma.hbm_to_vmem [thread:$0]  %s1, 256, %s33, [#allocation5], 128, 128, 8
    $region9: #{tpu_custom_call.1} parent=1 // pred_fallthru
      _
    // Predicated region
    $region10: #{tpu_custom_call.1} parent=1 // pred_check
      _
    $region11: #{tpu_custom_call.1} parent=1 // pred_check_branch
      %40 = sbr.rel (0) target = $region13
    $region12: #{tpu_custom_call.1} parent=1 // pred_region
      _
    $region13: #{tpu_custom_call.1} parent=1 // pred_fallthru
      _
    // Predicated region
    $region14: #{tpu_custom_call.1} parent=1 // pred_check
      _
    $region15: #{tpu_custom_call.1} parent=1 // pred_check_branch
      %42 = sbr.rel (0) target = $region17
    $region16: #{tpu_custom_call.1} parent=1 // pred_region
      %s44 = ssub.s32 2048, 2048
      %45 = vsyncadd [#allocation5], %s44
      %s46 = sshll.u32 [#allocation6], 4
      %s47 = int_to_ptr.vmem [resolvable:$true] %s46
      %52 = dma.hbm_to_vmem [thread:$0]  %s3, 2048, %s47, [#allocation5], 128, 128, 8
    $region17: #{tpu_custom_call.1} parent=1 // pred_fallthru
      _
    // Predicated region
    $region18: #{tpu_custom_call.1} parent=1 // pred_check
      _
    $region19: #{tpu_custom_call.1} parent=1 // pred_check_branch
      %54 = sbr.rel (0) target = $region21
    $region20: #{tpu_custom_call.1} parent=1 // pred_region
      _
    $region21: #{tpu_custom_call.1} parent=1 // pred_fallthru
      _
    // Predicated region
    $region22: #{tpu_custom_call.1} parent=1 // pred_check
      _
    $region23: #{tpu_custom_call.1} parent=1 // pred_check_branch
      %56 = sbr.rel (0) target = $region25
    $region24: #{tpu_custom_call.1} parent=1 // pred_region
      %s58 = ssub.s32 2048, 2048
      %59 = vsyncadd [#allocation8], %s58
      %s60 = sshll.u32 [#allocation7], 4
      %s61 = int_to_ptr.vmem [resolvable:$true] %s60
      %66 = dma.hbm_to_vmem [thread:$0]  %s5, 2048, %s61, [#allocation8], 128, 128, 8
    $region25: #{tpu_custom_call.1} parent=1 // pred_fallthru
      _
    // Predicated region
    $region26: #{tpu_custom_call.1} parent=1 // pred_check
      _
    $region27: #{tpu_custom_call.1} parent=1 // pred_check_branch
      %68 = sbr.rel (0) target = $region29
    $region28: #{tpu_custom_call.1} parent=1 // pred_region
      _
    $region29: #{tpu_custom_call.1} parent=1 // pred_fallthru
      _
    // Predicated region
    $region30: #{tpu_custom_call.1} parent=1 // pred_check
      _
    $region31: #{tpu_custom_call.1} parent=1 // pred_check_branch
      %70 = sbr.rel (0) target = $region33
    $region32: #{tpu_custom_call.1} parent=1 // pred_region
      %71 = dma.done [#allocation3], 256
    $region33: #{tpu_custom_call.1} parent=1 // pred_fallthru
      _
    // Predicated region
    $region34: #{tpu_custom_call.1} parent=1 // pred_check
      _
    $region35: #{tpu_custom_call.1} parent=1 // pred_check_branch
      %73 = sbr.rel (0) target = $region37
    $region36: #{tpu_custom_call.1} parent=1 // pred_region
      %74 = dma.done [#allocation5], 256
    $region37: #{tpu_custom_call.1} parent=1 // pred_fallthru
      _
    // Predicated region
    $region38: #{tpu_custom_call.1} parent=1 // pred_check
      _
    $region39: #{tpu_custom_call.1} parent=1 // pred_check_branch
      %76 = sbr.rel (0) target = $region41
    $region40: #{tpu_custom_call.1} parent=1 // pred_region
      %77 = dma.done [#allocation5], 2048
    $region41: #{tpu_custom_call.1} parent=1 // pred_fallthru
      _
    // Predicated region
    $region42: #{tpu_custom_call.1} parent=1 // pred_check
      _
    $region43: #{tpu_custom_call.1} parent=1 // pred_check_branch
      %79 = sbr.rel (0) target = $region45
    $region44: #{tpu_custom_call.1} parent=1 // pred_region
      %80 = dma.done [#allocation8], 2048
    $region45: #{tpu_custom_call.1} parent=1 // pred_fallthru
      _
    %v81 = vld [vmem:[#allocation2] sm:$0xff]
    %v82 = vld [vmem:[#allocation2 + $0x8] sm:$0xff]
    %v83 = vld [vmem:[#allocation4] sm:$0xff]
    %v84 = vld [vmem:[#allocation4 + $0x8] sm:$0xff]
    %v85 = vld [vmem:[%s2] sm:$0x1]
    %v87 = vlaneseq
    %v88 = vshrl.u32 %v87, 7
    %v89 = vsub.s32 0, %v88
    %v90 = vrot.slane %v85, %v89
    %vm92 = vcmask 130048
    %v94 = vsel %vm92, %v81, 0
    %v97 = vsel %vm92, %v82, 0
    %99 = vmatprep.subr.mxu0 0.0
    %100 = vmatpush1.msra.mxu0 %v83
    %101 = vmatprep.subr.mxu0 0.0
    %102 = vmatpush1.msra.mxu0 %v84
    %103 = vmatprep.subr.mxu0 0.0
    %104 = vmatpush1.msra.mxu0 0.0
    %105 = vmatprep.subr.mxu0 0.0
    %106 = vmatpush1.msra.mxu0 0.0
    %107 = vmatprep.subr.mxu0 0.0
    %108 = vmatpush1.msra.mxu0 0.0
    %109 = vmatprep.subr.mxu0 0.0
    %110 = vmatpush1.msra.mxu0 0.0
    %111 = vmatprep.subr.mxu0 0.0
    %112 = vmatpush1.msra.mxu0 0.0
    %113 = vmatprep.subr.mxu0 0.0
    %114 = vmatpush1.msra.mxu0 0.0
    %115 = vmatprep.subr.mxu0 0.0
    %116 = vmatpush1.msra.mxu0 0.0
    %117 = vmatprep.subr.mxu0 0.0
    %118 = vmatpush1.msra.mxu0 0.0
    %119 = vmatprep.subr.mxu0 0.0
    %120 = vmatpush1.msra.mxu0 0.0
    %121 = vmatprep.subr.mxu0 0.0
    %122 = vmatpush1.msra.mxu0 0.0
    %123 = vmatprep.subr.mxu0 0.0
    %124 = vmatpush1.msra.mxu0 0.0
    %125 = vmatprep.subr.mxu0 0.0
    %126 = vmatpush1.msra.mxu0 0.0
    %127 = vmatprep.subr.mxu0 0.0
    %128 = vmatpush1.msra.mxu0 0.0
    %129 = vmatprep.subr.mxu0 0.0
    %130 = vmatpush1.msra.mxu0 0.0
    %131 = vmatprep.subr.mxu0 0.0
    %132 = vmatpush1.msra.mxu0 0.0
    %133 = vmatprep.subr.mxu0 0.0
    %134 = vmatpush1.msra.mxu0 0.0
    %135 = vmatprep.subr.mxu0 0.0
    %136 = vmatpush1.msra.mxu0 0.0
    %137 = vmatprep.subr.mxu0 0.0
    %138 = vmatpush1.msra.mxu0 0.0
    %139 = vmatprep.subr.mxu0 0.0
    %140 = vmatpush1.msra.mxu0 0.0
    %141 = vmatprep.subr.mxu0 0.0
    %142 = vmatpush1.msra.mxu0 0.0
    %143 = vmatprep.subr.mxu0 0.0
    %144 = vmatpush1.msra.mxu0 0.0
    %145 = vmatprep.subr.mxu0 0.0
    %146 = vmatpush1.msra.mxu0 0.0
    %147 = vmatprep.subr.mxu0 0.0
    %148 = vmatpush1.msra.mxu0 0.0
    %149 = vmatprep.subr.mxu0 0.0
    %150 = vmatpush1.msra.mxu0 0.0
    %151 = vmatprep.subr.mxu0 0.0
    %152 = vmatpush1.msra.mxu0 0.0
    %153 = vmatprep.subr.mxu0 0.0
    %154 = vmatpush1.msra.mxu0 0.0
    %155 = vmatprep.subr.mxu0 0.0
    %156 = vmatpush1.msra.mxu0 0.0
    %157 = vmatprep.subr.mxu0 0.0
    %158 = vmatpush1.msra.mxu0 0.0
    %159 = vmatprep.subr.mxu0 0.0
    %160 = vmatpush1.msra.mxu0 0.0
    %161 = vmatprep.subr.mxu0 0.0
    %162 = vmatpush1.msra.mxu0 0.0
    %163 = vmatprep.mubr.f32.mxu0 0.0
    %164 = vmatmul.mubr.f32.gmra.mrb[0].mxu0 %v94
    %v165 = vpop.f32.mrb[0].mxu0
    %v166 = vadd.f32 %v90, %v165
    %v167 = vpop.f32.mrb[0].mxu0
    %168 = vmatprep.mubr.f32.mxu0 0.0
    %169 = vmatmul.mubr.f32.gmra.mrb[0].mxu0 %v97
    %v170 = vpop.f32.mrb[0].mxu0
    %v171 = vadd.f32 %v90, %v170
    %v172 = vpop.f32.mrb[0].mxu0
    %173 = vdwg.mxu0
    %v174 = vmax.f32 %v166, 0.0
    %v175 = vmax.f32 %v171, 0.0
    %v176 = vld [vmem:[#allocation6] sm:$0xff]
    %v177 = vld [vmem:[#allocation6 + $0x8] sm:$0xff]
    %v178 = vld [vmem:[#allocation6 + $0x10] sm:$0xff]
    %v179 = vld [vmem:[#allocation6 + $0x18] sm:$0xff]
    %v180 = vld [vmem:[#allocation6 + $0x20] sm:$0xff]
    %v181 = vld [vmem:[#allocation6 + $0x28] sm:$0xff]
    %v182 = vld [vmem:[#allocation6 + $0x30] sm:$0xff]
    %v183 = vld [vmem:[#allocation6 + $0x38] sm:$0xff]
    %v184 = vld [vmem:[#allocation6 + $0x40] sm:$0xff]
    %v185 = vld [vmem:[#allocation6 + $0x48] sm:$0xff]
    %v186 = vld [vmem:[#allocation6 + $0x50] sm:$0xff]
    %v187 = vld [vmem:[#allocation6 + $0x58] sm:$0xff]
    %v188 = vld [vmem:[#allocation6 + $0x60] sm:$0xff]
    %v189 = vld [vmem:[#allocation6 + $0x68] sm:$0xff]
    %v190 = vld [vmem:[#allocation6 + $0x70] sm:$0xff]
    %v191 = vld [vmem:[#allocation6 + $0x78] sm:$0xff]
    %v192 = vld [vmem:[%s4] sm:$0x1]
    %v194 = vlaneseq
    %v195 = vshrl.u32 %v194, 7
    %v196 = vsub.s32 0, %v195
    %v197 = vrot.slane %v192, %v196
    %199 = vmatprep.subr.mxu0 0.0
    %200 = vmatpush1.msra.mxu0 %v176
    %201 = vmatprep.subr.mxu0 0.0
    %202 = vmatpush1.msra.mxu0 %v177
    %203 = vmatprep.subr.mxu0 0.0
    %204 = vmatpush1.msra.mxu0 %v178
    %205 = vmatprep.subr.mxu0 0.0
    %206 = vmatpush1.msra.mxu0 %v179
    %207 = vmatprep.subr.mxu0 0.0
    %208 = vmatpush1.msra.mxu0 %v180
    %209 = vmatprep.subr.mxu0 0.0
    %210 = vmatpush1.msra.mxu0 %v181
    %211 = vmatprep.subr.mxu0 0.0
    %212 = vmatpush1.msra.mxu0 %v182
    %213 = vmatprep.subr.mxu0 0.0
    %214 = vmatpush1.msra.mxu0 %v183
    %215 = vmatprep.subr.mxu0 0.0
    %216 = vmatpush1.msra.mxu0 %v184
    %217 = vmatprep.subr.mxu0 0.0
    %218 = vmatpush1.msra.mxu0 %v185
    %219 = vmatprep.subr.mxu0 0.0
    %220 = vmatpush1.msra.mxu0 %v186
    %221 = vmatprep.subr.mxu0 0.0
    %222 = vmatpush1.msra.mxu0 %v187
    %223 = vmatprep.subr.mxu0 0.0
    %224 = vmatpush1.msra.mxu0 %v188
    %225 = vmatprep.subr.mxu0 0.0
    %226 = vmatpush1.msra.mxu0 %v189
    %227 = vmatprep.subr.mxu0 0.0
    %228 = vmatpush1.msra.mxu0 %v190
    %229 = vmatprep.subr.mxu0 0.0
    %230 = vmatpush1.msra.mxu0 %v191
    %231 = vmatprep.subr.mxu0 0.0
    %232 = vmatpush1.msra.mxu0 0.0
    %233 = vmatprep.subr.mxu0 0.0
    %234 = vmatpush1.msra.mxu0 0.0
    %235 = vmatprep.subr.mxu0 0.0
    %236 = vmatpush1.msra.mxu0 0.0
    %237 = vmatprep.subr.mxu0 0.0
    %238 = vmatpush1.msra.mxu0 0.0
    %239 = vmatprep.subr.mxu0 0.0
    %240 = vmatpush1.msra.mxu0 0.0
    %241 = vmatprep.subr.mxu0 0.0
    %242 = vmatpush1.msra.mxu0 0.0
    %243 = vmatprep.subr.mxu0 0.0
    %244 = vmatpush1.msra.mxu0 0.0
    %245 = vmatprep.subr.mxu0 0.0
    %246 = vmatpush1.msra.mxu0 0.0
    %247 = vmatprep.subr.mxu0 0.0
    %248 = vmatpush1.msra.mxu0 0.0
    %249 = vmatprep.subr.mxu0 0.0
    %250 = vmatpush1.msra.mxu0 0.0
    %251 = vmatprep.subr.mxu0 0.0
    %252 = vmatpush1.msra.mxu0 0.0
    %253 = vmatprep.subr.mxu0 0.0
    %254 = vmatpush1.msra.mxu0 0.0
    %255 = vmatprep.subr.mxu0 0.0
    %256 = vmatpush1.msra.mxu0 0.0
    %257 = vmatprep.subr.mxu0 0.0
    %258 = vmatpush1.msra.mxu0 0.0
    %259 = vmatprep.subr.mxu0 0.0
    %260 = vmatpush1.msra.mxu0 0.0
    %261 = vmatprep.subr.mxu0 0.0
    %262 = vmatpush1.msra.mxu0 0.0
    %263 = vmatprep.mubr.f32.mxu0 0.0
    %264 = vmatmul.mubr.f32.gmra.mrb[0].mxu0 %v174
    %v265 = vpop.f32.mrb[0].mxu0
    %v266 = vadd.f32 %v197, %v265
    %v267 = vpop.f32.mrb[0].mxu0
    %268 = vmatprep.mubr.f32.mxu0 0.0
    %269 = vmatmul.mubr.f32.gmra.mrb[0].mxu0 %v175
    %v270 = vpop.f32.mrb[0].mxu0
    %v271 = vadd.f32 %v197, %v270
    %v272 = vpop.f32.mrb[0].mxu0
    %273 = vdwg.mxu0
    %v274 = vmax.f32 %v266, 0.0
    %v275 = vmax.f32 %v271, 0.0
    %v276 = vld [vmem:[#allocation7] sm:$0xff]
    %v277 = vld [vmem:[#allocation7 + $0x8] sm:$0xff]
    %v278 = vld [vmem:[#allocation7 + $0x10] sm:$0xff]
    %v279 = vld [vmem:[#allocation7 + $0x18] sm:$0xff]
    %v280 = vld [vmem:[#allocation7 + $0x20] sm:$0xff]
    %v281 = vld [vmem:[#allocation7 + $0x28] sm:$0xff]
    %v282 = vld [vmem:[#allocation7 + $0x30] sm:$0xff]
    %v283 = vld [vmem:[#allocation7 + $0x38] sm:$0xff]
    %v284 = vld [vmem:[#allocation7 + $0x40] sm:$0xff]
    %v285 = vld [vmem:[#allocation7 + $0x48] sm:$0xff]
    %v286 = vld [vmem:[#allocation7 + $0x50] sm:$0xff]
    %v287 = vld [vmem:[#allocation7 + $0x58] sm:$0xff]
    %v288 = vld [vmem:[#allocation7 + $0x60] sm:$0xff]
    %v289 = vld [vmem:[#allocation7 + $0x68] sm:$0xff]
    %v290 = vld [vmem:[#allocation7 + $0x70] sm:$0xff]
    %v291 = vld [vmem:[#allocation7 + $0x78] sm:$0xff]
    %v292 = vld [vmem:[%s6] sm:$0x1]
    %v294 = vlaneseq
    %v295 = vshrl.u32 %v294, 7
    %v296 = vsub.s32 0, %v295
    %v297 = vrot.slane %v292, %v296
    %299 = vmatprep.subr.mxu0 0.0
    %300 = vmatpush1.msra.mxu0 %v276
    %301 = vmatprep.subr.mxu0 0.0
    %302 = vmatpush1.msra.mxu0 %v277
    %303 = vmatprep.subr.mxu0 0.0
    %304 = vmatpush1.msra.mxu0 %v278
    %305 = vmatprep.subr.mxu0 0.0
    %306 = vmatpush1.msra.mxu0 %v279
    %307 = vmatprep.subr.mxu0 0.0
    %308 = vmatpush1.msra.mxu0 %v280
    %309 = vmatprep.subr.mxu0 0.0
    %310 = vmatpush1.msra.mxu0 %v281
    %311 = vmatprep.subr.mxu0 0.0
    %312 = vmatpush1.msra.mxu0 %v282
    %313 = vmatprep.subr.mxu0 0.0
    %314 = vmatpush1.msra.mxu0 %v283
    %315 = vmatprep.subr.mxu0 0.0
    %316 = vmatpush1.msra.mxu0 %v284
    %317 = vmatprep.subr.mxu0 0.0
    %318 = vmatpush1.msra.mxu0 %v285
    %319 = vmatprep.subr.mxu0 0.0
    %320 = vmatpush1.msra.mxu0 %v286
    %321 = vmatprep.subr.mxu0 0.0
    %322 = vmatpush1.msra.mxu0 %v287
    %323 = vmatprep.subr.mxu0 0.0
    %324 = vmatpush1.msra.mxu0 %v288
    %325 = vmatprep.subr.mxu0 0.0
    %326 = vmatpush1.msra.mxu0 %v289
    %327 = vmatprep.subr.mxu0 0.0
    %328 = vmatpush1.msra.mxu0 %v290
    %329 = vmatprep.subr.mxu0 0.0
    %330 = vmatpush1.msra.mxu0 %v291
    %331 = vmatprep.subr.mxu0 0.0
    %332 = vmatpush1.msra.mxu0 0.0
    %333 = vmatprep.subr.mxu0 0.0
    %334 = vmatpush1.msra.mxu0 0.0
    %335 = vmatprep.subr.mxu0 0.0
    %336 = vmatpush1.msra.mxu0 0.0
    %337 = vmatprep.subr.mxu0 0.0
    %338 = vmatpush1.msra.mxu0 0.0
    %339 = vmatprep.subr.mxu0 0.0
    %340 = vmatpush1.msra.mxu0 0.0
    %341 = vmatprep.subr.mxu0 0.0
    %342 = vmatpush1.msra.mxu0 0.0
    %343 = vmatprep.subr.mxu0 0.0
    %344 = vmatpush1.msra.mxu0 0.0
    %345 = vmatprep.subr.mxu0 0.0
    %346 = vmatpush1.msra.mxu0 0.0
    %347 = vmatprep.subr.mxu0 0.0
    %348 = vmatpush1.msra.mxu0 0.0
    %349 = vmatprep.subr.mxu0 0.0
    %350 = vmatpush1.msra.mxu0 0.0
    %351 = vmatprep.subr.mxu0 0.0
    %352 = vmatpush1.msra.mxu0 0.0
    %353 = vmatprep.subr.mxu0 0.0
    %354 = vmatpush1.msra.mxu0 0.0
    %355 = vmatprep.subr.mxu0 0.0
    %356 = vmatpush1.msra.mxu0 0.0
    %357 = vmatprep.subr.mxu0 0.0
    %358 = vmatpush1.msra.mxu0 0.0
    %359 = vmatprep.subr.mxu0 0.0
    %360 = vmatpush1.msra.mxu0 0.0
    %361 = vmatprep.subr.mxu0 0.0
    %362 = vmatpush1.msra.mxu0 0.0
    %363 = vmatprep.mubr.f32.mxu0 0.0
    %364 = vmatmul.mubr.f32.gmra.mrb[0].mxu0 %v274
    %v365 = vpop.f32.mrb[0].mxu0
    %v366 = vadd.f32 %v297, %v365
    %v367 = vpop.f32.mrb[0].mxu0
    %368 = vmatprep.mubr.f32.mxu0 0.0
    %369 = vmatmul.mubr.f32.gmra.mrb[0].mxu0 %v275
    %v370 = vpop.f32.mrb[0].mxu0
    %v371 = vadd.f32 %v297, %v370
    %v372 = vpop.f32.mrb[0].mxu0
    %373 = vdwg.mxu0
    %vm374 = vcmask 31744
    %375 = vst.msk [vmem:[%s7] sm:$0xff] %vm374, %v366
    %376 = vst.msk [vmem:[%s7 + $0x8] sm:$0xff] %vm374, %v371
    // Predicated region
    $region46: #{tpu_custom_call.1} parent=1 // pred_check
      _
    $region47: #{tpu_custom_call.1} parent=1 // pred_check_branch
      %378 = sbr.rel (0) target = $region49
    $region48: #{tpu_custom_call.1} parent=1 // pred_region
      _
    $region49: #{tpu_custom_call.1} parent=1 // pred_fallthru
      _
    // Predicated region
    $region50: #{tpu_custom_call.1} parent=1 // pred_check
      _
    $region51: #{tpu_custom_call.1} parent=1 // pred_check_branch
      %380 = sbr.rel (0) target = $region53
    $region52: #{tpu_custom_call.1} parent=1 // pred_region
      _
    $region53: #{tpu_custom_call.1} parent=1 // pred_fallthru
      _
    %381 = vsyncpa [#allocation3], 1
    %382 = vsyncpa [#allocation5], 1
    %383 = vsyncpa [#allocation8], 1

</llo_original>
